<compile_context>
chip_gen: v7x
topology: tpu7x:2x2x1
jax: 0.10.0
libtpu: 0.0.40
codegen_flags: <defaults>
</compile_context>

<pallas_src>
import jax
import jax.numpy as jnp
from jax.experimental import pallas as pl
from jax.experimental.pallas import tpu as pltpu


_VMEM_SPEC = pl.BlockSpec(memory_space=pltpu.MemorySpace.VMEM)


def _round_up(x, m):
    return ((x + m - 1) // m) * m


# -----------------------------------------------------------------------------
# Static layout shared by pack_params() and the kernel factory
# -----------------------------------------------------------------------------
def _build_layout(input_size, latent_size, view_size):
    I, L, V = input_size, latent_size, view_size
    # ("name", fan_in, fan_out).  "first" is the fused block-diagonal matrix:
    #   rows 0:I   -> [ W1 (cols 0:64)        | 0            | Wmv (64+I:64+I+2V) ]
    #   rows I:2I  -> [ 0                     | Wedge (64:64+I) | 0               ]
    first_cols = 64 + I + 2 * V
    layer_dims = (
        ("first", 2 * I, first_cols),
        ("gcl2", 64, 32),
        ("gcl3", 32, 16),
        ("gcl4", 16, L),
        ("gcl5", L, 16),
        ("gcl6", 16, 32),
        ("gcl7", 32, 64),
        ("gcl8", 64, I),
    )
    w_offsets = {}
    off = 0
    for name, fin, _ in layer_dims:
        w_offsets[name] = off
        off = _round_up(off + fin, 16)          # bf16 sublane-tile alignment
    w_rows = _round_up(off, 16)
    w_cols = _round_up(max(fo for _, _, fo in layer_dims), 128)

    # Named bias-slab row mapping (so row offsets cannot silently drift).
    b_rows = {"first": 0, "gcl2": 1, "gcl3": 2, "gcl4": 3,
              "gcl5": 4, "gcl6": 5, "gcl7": 6, "gcl8": 7, "mv": 8}
    b_slab_shape = (_round_up(len(b_rows), 8), 128)

    return dict(I=I, L=L, V=V, first_cols=first_cols, layer_dims=layer_dims,
                w_offsets=w_offsets, w_rows=w_rows, w_cols=w_cols,
                b_rows=b_rows, b_slab_shape=b_slab_shape)


# -----------------------------------------------------------------------------
# Parameter construction (deterministic, synthetic) + one-time packing
# -----------------------------------------------------------------------------
def _glorot(key, fan_in, fan_out):
    limit = jnp.sqrt(6.0 / (fan_in + fan_out))
    return jax.random.uniform(key, (fan_in, fan_out), dtype=jnp.float32,
                              minval=-limit, maxval=limit)


def init_params(input_size, latent_size, view_size, seed=0):
    key = jax.random.PRNGKey(seed)
    dims = [
        ("gcl1", input_size, 64),
        ("gcl2", 64, 32),
        ("gcl3", 32, 16),
        ("gcl4", 16, latent_size),
        ("gcl5", latent_size, 16),
        ("gcl6", 16, 32),
        ("gcl7", 32, 64),
        ("gcl8", 64, input_size),
        ("mv_subseq", input_size, view_size),
        ("mv_subspace", input_size, view_size),
        ("edge_mp", input_size, input_size),
    ]
    params = {}
    keys = jax.random.split(key, 2 * len(dims))
    for i, (name, fi, fo) in enumerate(dims):
        params[name] = {
            "w": _glorot(keys[2 * i], fi, fo),
            "b": 0.1 * jax.random.normal(keys[2 * i + 1], (fo,),
                                         dtype=jnp.float32),
        }
    return params


def pack_params(params, input_size, latent_size, view_size):
    """One-time packing of all weights/biases into two VMEM-friendly slabs."""
    lay = _build_layout(input_size, latent_size, view_size)
    I, V = lay["I"], lay["V"]
    p = params

    # Fused first-stage block-diagonal weight.
    w_mv = jnp.concatenate([p["mv_subseq"]["w"], p["mv_subspace"]["w"]], axis=1)
    w_first = jnp.zeros((2 * I, lay["first_cols"]), jnp.float32)
    w_first = w_first.at[:I, :64].set(p["gcl1"]["w"])
    w_first = w_first.at[I:, 64:64 + I].set(p["edge_mp"]["w"])
    w_first = w_first.at[:I, 64 + I:].set(w_mv)

    entries = {"first": w_first}
    for name in ("gcl2", "gcl3", "gcl4", "gcl5", "gcl6", "gcl7", "gcl8"):
        entries[name] = p[name]["w"]

    w_slab = jnp.zeros((lay["w_rows"], lay["w_cols"]), jnp.float32)
    for name, w in entries.items():
        off = lay["w_offsets"][name]
        w_slab = w_slab.at[off:off + w.shape[0], :w.shape[1]].set(w)
    w_slab = w_slab.astype(jnp.bfloat16)

    b_mv = jnp.concatenate([p["mv_subseq"]["b"], p["mv_subspace"]["b"]], axis=0)
    b_first = jnp.concatenate([p["gcl1"]["b"], p["edge_mp"]["b"]], axis=0)
    b_slab = jnp.zeros(lay["b_slab_shape"], jnp.float32)
    b_slab = b_slab.at[lay["b_rows"]["first"], :64 + I].set(b_first)
    for name in ("gcl2", "gcl3", "gcl4", "gcl5", "gcl6", "gcl7", "gcl8"):
        b = p[name]["b"]
        b_slab = b_slab.at[lay["b_rows"][name], :b.shape[0]].set(b)
    b_slab = b_slab.at[lay["b_rows"]["mv"], :2 * V].set(b_mv)

    return w_slab, b_slab


# -----------------------------------------------------------------------------
# Fused kernel + jitted forward (factory closes over static dims)
# -----------------------------------------------------------------------------
def make_forward(input_size, latent_size, view_size):
    lay = _build_layout(input_size, latent_size, view_size)
    I, L, V = lay["I"], lay["L"], lay["V"]
    first_cols = lay["first_cols"]
    a_width = 64 + I                      # columns that go through the A pass
    w_off = lay["w_offsets"]
    b_row = lay["b_rows"]
    layer_dims = {n: (fi, fo) for n, fi, fo in lay["layer_dims"]}
    out_width = L + 2 * V + I + I         # encoded | views | edges | recon

    def kernel(a_ref, xe_ref, w_ref, b_ref, out_ref):
        a = a_ref[...]                    # (N, N) bf16 — reused by all 8 A passes
        xe = xe_ref[...]                  # (N, 2I) bf16, [node | edge] features

        def gcl(x, name, relu):
            fin, fout = layer_dims[name]
            off = w_off[name]
            w = w_ref[off:off + fin, :fout]                    # bf16
            b = b_ref[b_row[name]:b_row[name] + 1, :fout]      # f32
            xb = x.astype(jnp.bfloat16)
            if fout <= fin:
                # contract the NxN product against the narrower (output) width
                xw = jnp.dot(xb, w, preferred_element_type=jnp.float32)
                y = jnp.dot(a, xw.astype(jnp.bfloat16),
                            preferred_element_type=jnp.float32)
            else:
                ax = jnp.dot(a, xb, preferred_element_type=jnp.float32)
                y = jnp.dot(ax.astype(jnp.bfloat16), w,
                            preferred_element_type=jnp.float32)
            y = y + b
            return jnp.maximum(y, 0.0) if relu else y

        # ---- fused stage 1: gcl1 + multiview heads + edge message passing ----
        fin1, fout1 = layer_dims["first"]
        w1 = w_ref[w_off["first"]:w_off["first"] + fin1, :fout1]
        first = jnp.dot(xe, w1, preferred_element_type=jnp.float32)
        views = (first[:, a_width:a_width + 2 * V]
                 + b_ref[b_row["mv"]:b_row["mv"] + 1, :2 * V])
        y1 = jnp.dot(a, first[:, :a_width].astype(jnp.bfloat16),
                     preferred_element_type=jnp.float32)
        y1 = jnp.maximum(
            y1 + b_ref[b_row["first"]:b_row["first"] + 1, :a_width], 0.0)
        h = y1[:, :64]                    # relu(gcl1)
        edges = y1[:, 64:64 + I]          # relu(edge message passing)

        # ---- encoder ----
        h = gcl(h, "gcl2", True)
        h = gcl(h, "gcl3", True)
        encoded = gcl(h, "gcl4", False)

        # ---- decoder ----
        h = gcl(encoded, "gcl5", True)
        h = gcl(h, "gcl6", True)
        h = gcl(h, "gcl7", True)
        recon = gcl(h, "gcl8", False)

        # single packed store of only the used columns (wrapper slices apart)
        out_ref[...] = jnp.concatenate(
            [encoded, views, edges, recon], axis=1).astype(out_ref.dtype)

    def forward(adjacency_bf16, node_features, edge_features, w_slab, b_slab):
        n = adjacency_bf16.shape[0]
        xe = jnp.concatenate([node_features, edge_features],
                             axis=1).astype(jnp.bfloat16)

        # FLOP / byte estimate for the XLA scheduler.
        flops = 2 * n * (2 * I) * first_cols + 2 * n * n * a_width
        for name, fin, fout in lay["layer_dims"][1:]:
            flops += 2 * n * fin * fout + 2 * n * n * min(fin, fout)
        bytes_accessed = (2 * n * n + 2 * n * 2 * I
                          + 2 * lay["w_rows"] * lay["w_cols"]
                          + 4 * lay["b_slab_shape"][0] * lay["b_slab_shape"][1]
                          + 4 * n * out_width)

        working = bytes_accessed + 8 * n * 128 * 4     # f32 intermediates slack
        vmem_limit = int(min(48 << 20, max(32 << 20, 2 * working)))

        packed = pl.pallas_call(
            kernel,
            out_shape=jax.ShapeDtypeStruct((n, out_width), jnp.float32),
            in_specs=[_VMEM_SPEC] * 4,
            out_specs=_VMEM_SPEC,
            compiler_params=pltpu.CompilerParams(vmem_limit_bytes=vmem_limit),
            cost_estimate=pl.CostEstimate(flops=flops, transcendentals=0,
                                          bytes_accessed=bytes_accessed),
        )(adjacency_bf16, xe, w_slab, b_slab)

        o = 0
        encoded = packed[:, o:o + L]; o += L
        subsequence_view = packed[:, o:o + V]; o += V
        subspace_view = packed[:, o:o + V]; o += V
        updated_edge_features = packed[:, o:o + I]; o += I
        reconstructed_node_features = packed[:, o:o + I]
        return (encoded, subsequence_view, subspace_view,
                updated_edge_features, reconstructed_node_features)

    return jax.jit(forward)


# -----------------------------------------------------------------------------
# Main
# -----------------------------------------------------------------------------
if __name__ == "__main__":
    INPUT_SIZE = 16
    LATENT_SIZE = 8
    VIEW_SIZE = 4
    N_NODES = 32

    key = jax.random.PRNGKey(0)
    k_adj, k_nodes, k_edges = jax.random.split(key, 3)

    # Symmetric row-normalized adjacency with self-loops.
    raw = jax.random.uniform(k_adj, (N_NODES, N_NODES), dtype=jnp.float32)
    adj = (raw > 0.5).astype(jnp.float32)
    adj = jnp.maximum(adj, adj.T) + jnp.eye(N_NODES, dtype=jnp.float32)
    deg = jnp.sum(adj, axis=1, keepdims=True)
    adjacency_matrix = adj / deg
    adjacency_bf16 = adjacency_matrix.astype(jnp.bfloat16)   # cast once, reuse

    node_features = jax.random.normal(k_nodes, (N_NODES, INPUT_SIZE),
                                      dtype=jnp.float32)
    edge_features = jax.random.normal(k_edges, (N_NODES, INPUT_SIZE),
                                      dtype=jnp.float32)

    params = init_params(INPUT_SIZE, LATENT_SIZE, VIEW_SIZE, seed=0)
    w_slab, b_slab = pack_params(params, INPUT_SIZE, LATENT_SIZE, VIEW_SIZE)
    forward = make_forward(INPUT_SIZE, LATENT_SIZE, VIEW_SIZE)

    outputs = jax.block_until_ready(
        forward(adjacency_bf16, node_features, edge_features, w_slab, b_slab))

    # ---- pure-JAX reference replicating the kernel numerics (bf16 MXU
    #      operands, f32 accumulation, same matmul association) ----
    def dot_f32(a, b):
        return jnp.dot(a, b, preferred_element_type=jnp.float32)

    a_bf = adjacency_bf16
    x_bf = node_features.astype(jnp.bfloat16)
    e_bf = edge_features.astype(jnp.bfloat16)
    p = params

    def ref_gcl(x, w, b, relu):
        w_bf = w.astype(jnp.bfloat16)
        xb = x.astype(jnp.bfloat16)
        fin, fout = w.shape
        if fout <= fin:
            y = dot_f32(a_bf, dot_f32(xb, w_bf).astype(jnp.bfloat16))
        else:
            y = dot_f32(dot_f32(a_bf, xb).astype(jnp.bfloat16), w_bf)
        y = y + b.reshape(1, -1)
        return jnp.maximum(y, 0.0) if relu else y

    # Stage 1 replicates the fused kernel order: weight matmul first, then A.
    xw1 = dot_f32(x_bf, p["gcl1"]["w"].astype(jnp.bfloat16)).astype(jnp.bfloat16)
    r1 = jnp.maximum(dot_f32(a_bf, xw1) + p["gcl1"]["b"][None, :], 0.0)
    ew = dot_f32(e_bf, p["edge_mp"]["w"].astype(jnp.bfloat16)).astype(jnp.bfloat16)
    r_edges = jnp.maximum(dot_f32(a_bf, ew) + p["edge_mp"]["b"][None, :], 0.0)
    r_ssv = (dot_f32(x_bf, p["mv_subseq"]["w"].astype(jnp.bfloat16))
             + p["mv_subseq"]["b"][None, :])
    r_spv = (dot_f32(x_bf, p["mv_subspace"]["w"].astype(jnp.bfloat16))
             + p["mv_subspace"]["b"][None, :])

    rx = ref_gcl(r1, p["gcl2"]["w"], p["gcl2"]["b"], True)
    rx = ref_gcl(rx, p["gcl3"]["w"], p["gcl3"]["b"], True)
    r_encoded = ref_gcl(rx, p["gcl4"]["w"], p["gcl4"]["b"], False)
    rd = ref_gcl(r_encoded, p["gcl5"]["w"], p["gcl5"]["b"], True)
    rd = ref_gcl(rd, p["gcl6"]["w"], p["gcl6"]["b"], True)
    rd = ref_gcl(rd, p["gcl7"]["w"], p["gcl7"]["b"], True)
    r_recon = ref_gcl(rd, p["gcl8"]["w"], p["gcl8"]["b"], False)

    refs = (r_encoded, r_ssv, r_spv, r_edges, r_recon)
    names = ("encoded", "subsequence_view", "subspace_view",
             "updated_edge_features", "reconstructed_node_features")
    expected_shapes = [(N_NODES, LATENT_SIZE), (N_NODES, VIEW_SIZE),
                       (N_NODES, VIEW_SIZE), (N_NODES, INPUT_SIZE),
                       (N_NODES, INPUT_SIZE)]
    for out, ref, name, shp in zip(outputs, refs, names, expected_shapes):
        assert out.shape == shp, (name, out.shape, shp)
        assert out.dtype == jnp.float32, (name, out.dtype)
        assert jnp.allclose(out, ref, atol=1e-2, rtol=1e-2), (
            name, float(jnp.max(jnp.abs(out - ref))))

    print("KERNEL_OK")
</pallas_src>

<mosaic_0001>
module attributes {stable_mosaic.version = 11 : i64} {
  func.func @kernel(%arg0: memref<32x32xbf16, #tpu.memory_space<vmem>>, %arg1: memref<32x32xbf16, #tpu.memory_space<vmem>>, %arg2: memref<272x128xbf16, #tpu.memory_space<vmem>>, %arg3: memref<16x128xf32, #tpu.memory_space<vmem>>, %arg4: memref<32x48xf32, #tpu.memory_space<vmem>>) attributes {dimension_semantics = [], scalar_prefetch = 0 : i64, scratch_operands = 0 : i64, tpu.core_type = #tpu.core_type<tc>} {
    %c0 = arith.constant 0 : index
    %c0_0 = arith.constant 0 : index
    %0 = vector.load %arg0[%c0, %c0_0] : memref<32x32xbf16, #tpu.memory_space<vmem>>, vector<32x32xbf16>
    %c0_1 = arith.constant 0 : index
    %c0_2 = arith.constant 0 : index
    %1 = vector.load %arg1[%c0_1, %c0_2] : memref<32x32xbf16, #tpu.memory_space<vmem>>, vector<32x32xbf16>
    %c0_3 = arith.constant 0 : index
    %c0_4 = arith.constant 0 : index
    %2 = vector.load %arg2[%c0_3, %c0_4] : memref<272x128xbf16, #tpu.memory_space<vmem>>, vector<32x88xbf16>
    %cst = arith.constant dense<0.000000e+00> : vector<32x88xf32>
    %3 = tpu.matmul %1, %2, %cst {dimension_numbers = #tpu.dot_dimension_numbers<[1], [0], [0], [1], [0, 0, 1, 1], [], []>} : vector<32x32xbf16>, vector<32x88xbf16>, vector<32x88xf32> -> vector<32x88xf32>
    %4 = vector.extract_strided_slice %3 {offsets = [0, 80], sizes = [32, 8], strides = [1, 1]} : vector<32x88xf32> to vector<32x8xf32>
    %c8 = arith.constant 8 : index
    %c0_5 = arith.constant 0 : index
    %5 = vector.load %arg3[%c8, %c0_5] : memref<16x128xf32, #tpu.memory_space<vmem>>, vector<1x8xf32>
    %6 = vector.broadcast %5 : vector<1x8xf32> to vector<32x8xf32>
    %7 = arith.addf %4, %6 : vector<32x8xf32>
    %8 = vector.extract_strided_slice %3 {offsets = [0, 0], sizes = [32, 80], strides = [1, 1]} : vector<32x88xf32> to vector<32x80xf32>
    %9 = arith.truncf %8 : vector<32x80xf32> to vector<32x80xbf16>
    %cst_6 = arith.constant dense<0.000000e+00> : vector<32x80xf32>
    %10 = tpu.matmul %0, %9, %cst_6 {dimension_numbers = #tpu.dot_dimension_numbers<[1], [0], [0], [1], [0, 0, 1, 1], [], []>} : vector<32x32xbf16>, vector<32x80xbf16>, vector<32x80xf32> -> vector<32x80xf32>
    %c0_7 = arith.constant 0 : index
    %c0_8 = arith.constant 0 : index
    %11 = vector.load %arg3[%c0_7, %c0_8] : memref<16x128xf32, #tpu.memory_space<vmem>>, vector<1x80xf32>
    %12 = vector.broadcast %11 : vector<1x80xf32> to vector<32x80xf32>
    %13 = arith.addf %10, %12 : vector<32x80xf32>
    %cst_9 = arith.constant 0.000000e+00 : f32
    %14 = vector.broadcast %cst_9 : f32 to vector<32x80xf32>
    %15 = arith.maximumf %13, %14 : vector<32x80xf32>
    %16 = vector.extract_strided_slice %15 {offsets = [0, 0], sizes = [32, 64], strides = [1, 1]} : vector<32x80xf32> to vector<32x64xf32>
    %17 = vector.extract_strided_slice %15 {offsets = [0, 64], sizes = [32, 16], strides = [1, 1]} : vector<32x80xf32> to vector<32x16xf32>
    %c32 = arith.constant 32 : index
    %c0_10 = arith.constant 0 : index
    %18 = vector.load %arg2[%c32, %c0_10] : memref<272x128xbf16, #tpu.memory_space<vmem>>, vector<64x32xbf16>
    %c1 = arith.constant 1 : index
    %c0_11 = arith.constant 0 : index
    %19 = vector.load %arg3[%c1, %c0_11] : memref<16x128xf32, #tpu.memory_space<vmem>>, vector<1x32xf32>
    %20 = arith.truncf %16 : vector<32x64xf32> to vector<32x64xbf16>
    %cst_12 = arith.constant dense<0.000000e+00> : vector<32x32xf32>
    %21 = tpu.matmul %20, %18, %cst_12 {dimension_numbers = #tpu.dot_dimension_numbers<[1], [0], [0], [1], [0, 0, 1, 1], [], []>} : vector<32x64xbf16>, vector<64x32xbf16>, vector<32x32xf32> -> vector<32x32xf32>
    %22 = arith.truncf %21 : vector<32x32xf32> to vector<32x32xbf16>
    %cst_13 = arith.constant dense<0.000000e+00> : vector<32x32xf32>
    %23 = tpu.matmul %0, %22, %cst_13 {dimension_numbers = #tpu.dot_dimension_numbers<[1], [0], [0], [1], [0, 0, 1, 1], [], []>} : vector<32x32xbf16>, vector<32x32xbf16>, vector<32x32xf32> -> vector<32x32xf32>
    %24 = vector.broadcast %19 : vector<1x32xf32> to vector<32x32xf32>
    %25 = arith.addf %23, %24 : vector<32x32xf32>
    %cst_14 = arith.constant 0.000000e+00 : f32
    %26 = vector.broadcast %cst_14 : f32 to vector<32x32xf32>
    %27 = arith.maximumf %25, %26 : vector<32x32xf32>
    %c96 = arith.constant 96 : index
    %c0_15 = arith.constant 0 : index
    %28 = vector.load %arg2[%c96, %c0_15] : memref<272x128xbf16, #tpu.memory_space<vmem>>, vector<32x16xbf16>
    %c2 = arith.constant 2 : index
    %c0_16 = arith.constant 0 : index
    %29 = vector.load %arg3[%c2, %c0_16] : memref<16x128xf32, #tpu.memory_space<vmem>>, vector<1x16xf32>
    %30 = arith.truncf %27 : vector<32x32xf32> to vector<32x32xbf16>
    %cst_17 = arith.constant dense<0.000000e+00> : vector<32x16xf32>
    %31 = tpu.matmul %30, %28, %cst_17 {dimension_numbers = #tpu.dot_dimension_numbers<[1], [0], [0], [1], [0, 0, 1, 1], [], []>} : vector<32x32xbf16>, vector<32x16xbf16>, vector<32x16xf32> -> vector<32x16xf32>
    %32 = arith.truncf %31 : vector<32x16xf32> to vector<32x16xbf16>
    %cst_18 = arith.constant dense<0.000000e+00> : vector<32x16xf32>
    %33 = tpu.matmul %0, %32, %cst_18 {dimension_numbers = #tpu.dot_dimension_numbers<[1], [0], [0], [1], [0, 0, 1, 1], [], []>} : vector<32x32xbf16>, vector<32x16xbf16>, vector<32x16xf32> -> vector<32x16xf32>
    %34 = vector.broadcast %29 : vector<1x16xf32> to vector<32x16xf32>
    %35 = arith.addf %33, %34 : vector<32x16xf32>
    %cst_19 = arith.constant 0.000000e+00 : f32
    %36 = vector.broadcast %cst_19 : f32 to vector<32x16xf32>
    %37 = arith.maximumf %35, %36 : vector<32x16xf32>
    %c128 = arith.constant 128 : index
    %c0_20 = arith.constant 0 : index
    %38 = vector.load %arg2[%c128, %c0_20] : memref<272x128xbf16, #tpu.memory_space<vmem>>, vector<16x8xbf16>
    %c3 = arith.constant 3 : index
    %c0_21 = arith.constant 0 : index
    %39 = vector.load %arg3[%c3, %c0_21] : memref<16x128xf32, #tpu.memory_space<vmem>>, vector<1x8xf32>
    %40 = arith.truncf %37 : vector<32x16xf32> to vector<32x16xbf16>
    %cst_22 = arith.constant dense<0.000000e+00> : vector<32x8xf32>
    %41 = tpu.matmul %40, %38, %cst_22 {dimension_numbers = #tpu.dot_dimension_numbers<[1], [0], [0], [1], [0, 0, 1, 1], [], []>} : vector<32x16xbf16>, vector<16x8xbf16>, vector<32x8xf32> -> vector<32x8xf32>
    %42 = arith.truncf %41 : vector<32x8xf32> to vector<32x8xbf16>
    %cst_23 = arith.constant dense<0.000000e+00> : vector<32x8xf32>
    %43 = tpu.matmul %0, %42, %cst_23 {dimension_numbers = #tpu.dot_dimension_numbers<[1], [0], [0], [1], [0, 0, 1, 1], [], []>} : vector<32x32xbf16>, vector<32x8xbf16>, vector<32x8xf32> -> vector<32x8xf32>
    %44 = vector.broadcast %39 : vector<1x8xf32> to vector<32x8xf32>
    %45 = arith.addf %43, %44 : vector<32x8xf32>
    %c144 = arith.constant 144 : index
    %c0_24 = arith.constant 0 : index
    %46 = vector.load %arg2[%c144, %c0_24] : memref<272x128xbf16, #tpu.memory_space<vmem>>, vector<8x16xbf16>
    %c4 = arith.constant 4 : index
    %c0_25 = arith.constant 0 : index
    %47 = vector.load %arg3[%c4, %c0_25] : memref<16x128xf32, #tpu.memory_space<vmem>>, vector<1x16xf32>
    %48 = arith.truncf %45 : vector<32x8xf32> to vector<32x8xbf16>
    %cst_26 = arith.constant dense<0.000000e+00> : vector<32x8xf32>
    %49 = tpu.matmul %0, %48, %cst_26 {dimension_numbers = #tpu.dot_dimension_numbers<[1], [0], [0], [1], [0, 0, 1, 1], [], []>} : vector<32x32xbf16>, vector<32x8xbf16>, vector<32x8xf32> -> vector<32x8xf32>
    %50 = arith.truncf %49 : vector<32x8xf32> to vector<32x8xbf16>
    %cst_27 = arith.constant dense<0.000000e+00> : vector<32x16xf32>
    %51 = tpu.matmul %50, %46, %cst_27 {dimension_numbers = #tpu.dot_dimension_numbers<[1], [0], [0], [1], [0, 0, 1, 1], [], []>} : vector<32x8xbf16>, vector<8x16xbf16>, vector<32x16xf32> -> vector<32x16xf32>
    %52 = vector.broadcast %47 : vector<1x16xf32> to vector<32x16xf32>
    %53 = arith.addf %51, %52 : vector<32x16xf32>
    %cst_28 = arith.constant 0.000000e+00 : f32
    %54 = vector.broadcast %cst_28 : f32 to vector<32x16xf32>
    %55 = arith.maximumf %53, %54 : vector<32x16xf32>
    %c160 = arith.constant 160 : index
    %c0_29 = arith.constant 0 : index
    %56 = vector.load %arg2[%c160, %c0_29] : memref<272x128xbf16, #tpu.memory_space<vmem>>, vector<16x32xbf16>
    %c5 = arith.constant 5 : index
    %c0_30 = arith.constant 0 : index
    %57 = vector.load %arg3[%c5, %c0_30] : memref<16x128xf32, #tpu.memory_space<vmem>>, vector<1x32xf32>
    %58 = arith.truncf %55 : vector<32x16xf32> to vector<32x16xbf16>
    %cst_31 = arith.constant dense<0.000000e+00> : vector<32x16xf32>
    %59 = tpu.matmul %0, %58, %cst_31 {dimension_numbers = #tpu.dot_dimension_numbers<[1], [0], [0], [1], [0, 0, 1, 1], [], []>} : vector<32x32xbf16>, vector<32x16xbf16>, vector<32x16xf32> -> vector<32x16xf32>
    %60 = arith.truncf %59 : vector<32x16xf32> to vector<32x16xbf16>
    %cst_32 = arith.constant dense<0.000000e+00> : vector<32x32xf32>
    %61 = tpu.matmul %60, %56, %cst_32 {dimension_numbers = #tpu.dot_dimension_numbers<[1], [0], [0], [1], [0, 0, 1, 1], [], []>} : vector<32x16xbf16>, vector<16x32xbf16>, vector<32x32xf32> -> vector<32x32xf32>
    %62 = vector.broadcast %57 : vector<1x32xf32> to vector<32x32xf32>
    %63 = arith.addf %61, %62 : vector<32x32xf32>
    %cst_33 = arith.constant 0.000000e+00 : f32
    %64 = vector.broadcast %cst_33 : f32 to vector<32x32xf32>
    %65 = arith.maximumf %63, %64 : vector<32x32xf32>
    %c176 = arith.constant 176 : index
    %c0_34 = arith.constant 0 : index
    %66 = vector.load %arg2[%c176, %c0_34] : memref<272x128xbf16, #tpu.memory_space<vmem>>, vector<32x64xbf16>
    %c6 = arith.constant 6 : index
    %c0_35 = arith.constant 0 : index
    %67 = vector.load %arg3[%c6, %c0_35] : memref<16x128xf32, #tpu.memory_space<vmem>>, vector<1x64xf32>
    %68 = arith.truncf %65 : vector<32x32xf32> to vector<32x32xbf16>
    %cst_36 = arith.constant dense<0.000000e+00> : vector<32x32xf32>
    %69 = tpu.matmul %0, %68, %cst_36 {dimension_numbers = #tpu.dot_dimension_numbers<[1], [0], [0], [1], [0, 0, 1, 1], [], []>} : vector<32x32xbf16>, vector<32x32xbf16>, vector<32x32xf32> -> vector<32x32xf32>
    %70 = arith.truncf %69 : vector<32x32xf32> to vector<32x32xbf16>
    %cst_37 = arith.constant dense<0.000000e+00> : vector<32x64xf32>
    %71 = tpu.matmul %70, %66, %cst_37 {dimension_numbers = #tpu.dot_dimension_numbers<[1], [0], [0], [1], [0, 0, 1, 1], [], []>} : vector<32x32xbf16>, vector<32x64xbf16>, vector<32x64xf32> -> vector<32x64xf32>
    %72 = vector.broadcast %67 : vector<1x64xf32> to vector<32x64xf32>
    %73 = arith.addf %71, %72 : vector<32x64xf32>
    %cst_38 = arith.constant 0.000000e+00 : f32
    %74 = vector.broadcast %cst_38 : f32 to vector<32x64xf32>
    %75 = arith.maximumf %73, %74 : vector<32x64xf32>
    %c208 = arith.constant 208 : index
    %c0_39 = arith.constant 0 : index
    %76 = vector.load %arg2[%c208, %c0_39] : memref<272x128xbf16, #tpu.memory_space<vmem>>, vector<64x16xbf16>
    %c7 = arith.constant 7 : index
    %c0_40 = arith.constant 0 : index
    %77 = vector.load %arg3[%c7, %c0_40] : memref<16x128xf32, #tpu.memory_space<vmem>>, vector<1x16xf32>
    %78 = arith.truncf %75 : vector<32x64xf32> to vector<32x64xbf16>
    %cst_41 = arith.constant dense<0.000000e+00> : vector<32x16xf32>
    %79 = tpu.matmul %78, %76, %cst_41 {dimension_numbers = #tpu.dot_dimension_numbers<[1], [0], [0], [1], [0, 0, 1, 1], [], []>} : vector<32x64xbf16>, vector<64x16xbf16>, vector<32x16xf32> -> vector<32x16xf32>
    %80 = arith.truncf %79 : vector<32x16xf32> to vector<32x16xbf16>
    %cst_42 = arith.constant dense<0.000000e+00> : vector<32x16xf32>
    %81 = tpu.matmul %0, %80, %cst_42 {dimension_numbers = #tpu.dot_dimension_numbers<[1], [0], [0], [1], [0, 0, 1, 1], [], []>} : vector<32x32xbf16>, vector<32x16xbf16>, vector<32x16xf32> -> vector<32x16xf32>
    %82 = vector.broadcast %77 : vector<1x16xf32> to vector<32x16xf32>
    %83 = arith.addf %81, %82 : vector<32x16xf32>
    %84 = tpu.concatenate %45, %7, %17, %83 in 1 : vector<32x8xf32>, vector<32x8xf32>, vector<32x16xf32>, vector<32x16xf32> -> vector<32x48xf32>
    %c0_43 = arith.constant 0 : index
    %c0_44 = arith.constant 0 : index
    %85 = vector.load %arg4[%c0_43, %c0_44] : memref<32x48xf32, #tpu.memory_space<vmem>>, vector<32x48xf32>
    tpu.vector_store %arg4[%c0_43, %c0_44], %84 {strides = array<i32>} : memref<32x48xf32, #tpu.memory_space<vmem>>, vector<32x48xf32>,
    return
  }
}

</mosaic_0001>

<llo_original>
// kernel: forward.1
$region0: #{forward.1}
  #allocation0 [shape = 'u32[]', space=smem, size = 0x4, offset = 0x4, fixed_abs, tag = 'smem constant byte address 0x4 - core index']
  #allocation1 [shape = 'u32[144,128]{1,0:T(1,128)}', space=vmem, size = 0x12000, scoped, tag = 'internal scratch']
  %s0 = inlined_call_operand.vmem [shape: bf16[32,32], index: 0, kind: input, shape index: {}]
  %s1 = inlined_call_operand.vmem [shape: bf16[32,32], index: 1, kind: input, shape index: {}]
  %s2 = inlined_call_operand.vmem [shape: bf16[272,128], index: 2, kind: input, shape index: {}]
  %s3 = inlined_call_operand.hbm [shape: f32[16,128], index: 3, kind: input, shape index: {}]
  %s4 = inlined_call_operand.vmem [shape: f32[32,48], index: 4, kind: output, shape index: {}]
  %s5 = sld [smem:[#allocation0]]
  $region30: #{forward.1} parent=0
    _
  %s7 = ssub.s32 1, %s5
  %s8 = scalar_select 0, %s7, %s5
  $region1: #{forward.1} parent=0
    #allocation2 [shape = 'u8[8192]{0}', space=vmem, size = 0x2000, scoped, tag = 'input window, operand 3, single buffered']
    #allocation3 [shape = 's32[1]{0}', space=sflag, size = 0x4, scoped, tag = 'scoped memory for forward.1']
    %9 = vsyncpa [#allocation3], 0
    // Predicated region
    $region2: #{forward.1} parent=1 // pred_check
      _
    $region3: #{forward.1} parent=1 // pred_check_branch
      %11 = sbr.rel (0) target = $region5
    $region4: #{forward.1} parent=1 // pred_region
      _
    $region5: #{forward.1} parent=1 // pred_fallthru
      _
    // Predicated region
    $region6: #{forward.1} parent=1 // pred_check
      _
    $region7: #{forward.1} parent=1 // pred_check_branch
      %13 = sbr.rel (0) target = $region9
    $region8: #{forward.1} parent=1 // pred_region
      _
    $region9: #{forward.1} parent=1 // pred_fallthru
      _
    // Predicated region
    $region10: #{forward.1} parent=1 // pred_check
      _
    $region11: #{forward.1} parent=1 // pred_check_branch
      %15 = sbr.rel (0) target = $region13
    $region12: #{forward.1} parent=1 // pred_region
      _
    $region13: #{forward.1} parent=1 // pred_fallthru
      _
    // Predicated region
    $region14: #{forward.1} parent=1 // pred_check
      _
    $region15: #{forward.1} parent=1 // pred_check_branch
      %17 = sbr.rel (0) target = $region17
    $region16: #{forward.1} parent=1 // pred_region
      %s19 = ssub.s32 256, 256
      %20 = vsyncadd [#allocation3], %s19
      %s21 = sshll.u32 [#allocation2], 4
      %s22 = int_to_ptr.vmem [resolvable:$true] %s21
      %27 = dma.hbm_to_vmem [thread:$0]  %s3, 256, %s22, [#allocation3], 128, 128, 8
    $region17: #{forward.1} parent=1 // pred_fallthru
      _
    // Predicated region
    $region18: #{forward.1} parent=1 // pred_check
      _
    $region19: #{forward.1} parent=1 // pred_check_branch
      %29 = sbr.rel (0) target = $region21
    $region20: #{forward.1} parent=1 // pred_region
      %30 = dma.done [#allocation3], 256
    $region21: #{forward.1} parent=1 // pred_fallthru
      _
    %v32 = vld [vmem:[%s0] sm:$0xf]
    %v33 = vld [vmem:[%s0 + $0x4] sm:$0xf]
    %v34 = vld [vmem:[%s0 + $0x8] sm:$0xf]
    %v35 = vld [vmem:[%s0 + $0xc] sm:$0xf]
    %v36 = vld [vmem:[%s1] sm:$0xf]
    %v37 = vld [vmem:[%s1 + $0x4] sm:$0xf]
    %v38 = vld [vmem:[%s1 + $0x8] sm:$0xf]
    %v39 = vld [vmem:[%s1 + $0xc] sm:$0xf]
    %v40 = vld [vmem:[%s2] sm:$0xf]
    %v41 = vld [vmem:[%s2 + $0x4] sm:$0xf]
    %v42 = vld [vmem:[%s2 + $0x8] sm:$0xf]
    %v43 = vld [vmem:[%s2 + $0xc] sm:$0xf]
    %v48 = vunpack.c.l.b16 %v36
    %v49 = vunpack.c.l.b16 %v37
    %v50 = vunpack.c.l.b16 %v38
    %v51 = vunpack.c.l.b16 %v39
    %v52 = vpack.c.b16 %v49, %v48
    %v53 = vpack.c.b16 %v51, %v50
    %v58 = vunpack.c.l.b16 %v40
    %v59 = vunpack.c.l.b16 %v41
    %v60 = vunpack.c.l.b16 %v42
    %v61 = vunpack.c.l.b16 %v43
    %v62 = vpack.c.b16 %v59, %v58
    %v63 = vpack.c.b16 %v61, %v60
    %vm66 = vcmask 261120
    %v68 = vsel %vm66, %v52, 0
    %v71 = vsel %vm66, %v53, 0
    %73 = vmatprep.subr.bf16.mxu0 0
    %74 = vmatpush1.bf16.msra.mxu0 %v62
    %75 = vmatprep.subr.bf16.mxu0 0
    %76 = vmatpush1.bf16.msra.mxu0 %v63
    %77 = vmatprep.subr.bf16.mxu0 0
    %78 = vmatpush1.bf16.msra.mxu0 0
    %79 = vmatprep.subr.bf16.mxu0 0
    %80 = vmatpush1.bf16.msra.mxu0 0
    %81 = vmatprep.subr.bf16.mxu0 0
    %82 = vmatpush1.bf16.msra.mxu0 0
    %83 = vmatprep.subr.bf16.mxu0 0
    %84 = vmatpush1.bf16.msra.mxu0 0
    %85 = vmatprep.subr.bf16.mxu0 0
    %86 = vmatpush1.bf16.msra.mxu0 0
    %87 = vmatprep.subr.bf16.mxu0 0
    %88 = vmatpush1.bf16.msra.mxu0 0
    %89 = vmatprep.subr.bf16.mxu0 0
    %90 = vmatpush1.bf16.msra.mxu0 0
    %91 = vmatprep.subr.bf16.mxu0 0
    %92 = vmatpush1.bf16.msra.mxu0 0
    %93 = vmatprep.subr.bf16.mxu0 0
    %94 = vmatpush1.bf16.msra.mxu0 0
    %95 = vmatprep.subr.bf16.mxu0 0
    %96 = vmatpush1.bf16.msra.mxu0 0
    %97 = vmatprep.subr.bf16.mxu0 0
    %98 = vmatpush1.bf16.msra.mxu0 0
    %99 = vmatprep.subr.bf16.mxu0 0
    %100 = vmatpush1.bf16.msra.mxu0 0
    %101 = vmatprep.subr.bf16.mxu0 0
    %102 = vmatpush1.bf16.msra.mxu0 0
    %103 = vmatprep.subr.bf16.mxu0 0
    %104 = vmatpush1.bf16.msra.mxu0 0
    %105 = vmatprep.mubr.bf16.mxu0 0
    %106 = vmatmul.mubr.bf16.gmra.mrb[0].mxu0 %v68
    %v107 = vpop.f32.mrb[0].mxu0
    %v108 = vadd.f32 0.0, %v107
    %v109 = vpop.f32.mrb[0].mxu0
    %v110 = vpop.f32.mrb[0].mxu0
    %v111 = vadd.f32 0.0, %v110
    %v112 = vpop.f32.mrb[0].mxu0
    %113 = vmatprep.mubr.bf16.mxu0 0
    %114 = vmatmul.mubr.bf16.gmra.mrb[0].mxu0 %v71
    %v115 = vpop.f32.mrb[0].mxu0
    %v116 = vadd.f32 0.0, %v115
    %v117 = vpop.f32.mrb[0].mxu0
    %v118 = vpop.f32.mrb[0].mxu0
    %v119 = vadd.f32 0.0, %v118
    %v120 = vpop.f32.mrb[0].mxu0
    %121 = vdwg.mxu0
    %v122 = vld [vmem:[#allocation2 + $0x8] sm:$0x1]
    %v123 = vlaneseq
    %v124 = vshrl.u32 %v123, 7
    %v125 = vsub.s32 0, %v124
    %v126 = vrot.slane %v122, %v125
    %128 = vrot.lane.b32.xlu0 %v126, 80
    %v129 = vpop.permute.xlu0 %128
    %v131 = vadd.f32 %v108, %v129
    %v132 = vadd.f32 %v111, %v129
    %v133 = vadd.f32 %v116, %v129
    %v134 = vadd.f32 %v119, %v129
    %v135 = vpack.c.bf16 %v111, %v108
    %v136 = vpack.c.bf16 %v119, %v116
    %v137 = vld [vmem:[#allocation2] sm:$0x1]
    %v138 = vlaneseq
    %v139 = vshrl.u32 %v138, 7
    %v140 = vsub.s32 0, %v139
    %v141 = vrot.slane %v137, %v140
    %v146 = vunpack.c.l.b16 %v32
    %v147 = vunpack.c.l.b16 %v33
    %v148 = vunpack.c.l.b16 %v34
    %v149 = vunpack.c.l.b16 %v35
    %v150 = vpack.c.b16 %v147, %v146
    %v151 = vpack.c.b16 %v149, %v148
    %v153 = vsel %vm66, %v150, 0
    %v156 = vsel %vm66, %v151, 0
    %158 = vmatprep.subr.bf16.mxu0 0
    %159 = vmatpush1.bf16.msra.mxu0 %v135
    %160 = vmatprep.subr.bf16.mxu0 0
    %161 = vmatpush1.bf16.msra.mxu0 %v136
    %162 = vmatprep.subr.bf16.mxu0 0
    %163 = vmatpush1.bf16.msra.mxu0 0
    %164 = vmatprep.subr.bf16.mxu0 0
    %165 = vmatpush1.bf16.msra.mxu0 0
    %166 = vmatprep.subr.bf16.mxu0 0
    %167 = vmatpush1.bf16.msra.mxu0 0
    %168 = vmatprep.subr.bf16.mxu0 0
    %169 = vmatpush1.bf16.msra.mxu0 0
    %170 = vmatprep.subr.bf16.mxu0 0
    %171 = vmatpush1.bf16.msra.mxu0 0
    %172 = vmatprep.subr.bf16.mxu0 0
    %173 = vmatpush1.bf16.msra.mxu0 0
    %174 = vmatprep.subr.bf16.mxu0 0
    %175 = vmatpush1.bf16.msra.mxu0 0
    %176 = vmatprep.subr.bf16.mxu0 0
    %177 = vmatpush1.bf16.msra.mxu0 0
    %178 = vmatprep.subr.bf16.mxu0 0
    %179 = vmatpush1.bf16.msra.mxu0 0
    %180 = vmatprep.subr.bf16.mxu0 0
    %181 = vmatpush1.bf16.msra.mxu0 0
    %182 = vmatprep.subr.bf16.mxu0 0
    %183 = vmatpush1.bf16.msra.mxu0 0
    %184 = vmatprep.subr.bf16.mxu0 0
    %185 = vmatpush1.bf16.msra.mxu0 0
    %186 = vmatprep.subr.bf16.mxu0 0
    %187 = vmatpush1.bf16.msra.mxu0 0
    %188 = vmatprep.subr.bf16.mxu0 0
    %189 = vmatpush1.bf16.msra.mxu0 0
    %190 = vmatprep.mubr.bf16.mxu0 0
    %191 = vmatmul.mubr.bf16.gmra.mrb[0].mxu0 %v153
    %v192 = vpop.f32.mrb[0].mxu0
    %v193 = vadd.f32 %v141, %v192
    %v194 = vpop.f32.mrb[0].mxu0
    %v195 = vpop.f32.mrb[0].mxu0
    %v196 = vadd.f32 %v141, %v195
    %v197 = vpop.f32.mrb[0].mxu0
    %198 = vmatprep.mubr.bf16.mxu0 0
    %199 = vmatmul.mubr.bf16.gmra.mrb[0].mxu0 %v156
    %v200 = vpop.f32.mrb[0].mxu0
    %v201 = vadd.f32 %v141, %v200
    %v202 = vpop.f32.mrb[0].mxu0
    %v203 = vpop.f32.mrb[0].mxu0
    %v204 = vadd.f32 %v141, %v203
    %v205 = vpop.f32.mrb[0].mxu0
    %206 = vdwg.mxu0
    %v207 = vmax.f32 %v193, 0.0
    %v208 = vmax.f32 %v196, 0.0
    %v209 = vmax.f32 %v201, 0.0
    %v210 = vmax.f32 %v204, 0.0
    %v211 = vld [vmem:[%s2 + $0x10] sm:$0xf]
    %v212 = vld [vmem:[%s2 + $0x14] sm:$0xf]
    %v213 = vld [vmem:[%s2 + $0x18] sm:$0xf]
    %v214 = vld [vmem:[%s2 + $0x1c] sm:$0xf]
    %v215 = vld [vmem:[%s2 + $0x20] sm:$0xf]
    %v216 = vld [vmem:[%s2 + $0x24] sm:$0xf]
    %v217 = vld [vmem:[%s2 + $0x28] sm:$0xf]
    %v218 = vld [vmem:[%s2 + $0x2c] sm:$0xf]
    %v219 = vld [vmem:[#allocation2 + $0x1] sm:$0x1]
    %v220 = vpack.c.bf16 %v208, %v207
    %v221 = vpack.c.bf16 %v210, %v209
    %v230 = vunpack.c.l.b16 %v211
    %v231 = vunpack.c.l.b16 %v212
    %v232 = vunpack.c.l.b16 %v213
    %v233 = vunpack.c.l.b16 %v214
    %v234 = vunpack.c.l.b16 %v215
    %v235 = vunpack.c.l.b16 %v216
    %v236 = vunpack.c.l.b16 %v217
    %v237 = vunpack.c.l.b16 %v218
    %v238 = vpack.c.b16 %v231, %v230
    %v239 = vpack.c.b16 %v233, %v232
    %v240 = vpack.c.b16 %v235, %v234
    %v241 = vpack.c.b16 %v237, %v236
    %vm246 = vcmask 523264
    %v248 = vsel %vm246, %v220, 0
    %v251 = vsel %vm246, %v221, 0
    %253 = vmatprep.subr.bf16.mxu0 0
    %254 = vmatpush1.bf16.msra.mxu0 %v238
    %255 = vmatprep.subr.bf16.mxu0 0
    %256 = vmatpush1.bf16.msra.mxu0 %v239
    %257 = vmatprep.subr.bf16.mxu0 0
    %258 = vmatpush1.bf16.msra.mxu0 %v240
    %259 = vmatprep.subr.bf16.mxu0 0
    %260 = vmatpush1.bf16.msra.mxu0 %v241
    %261 = vmatprep.subr.bf16.mxu0 0
    %262 = vmatpush1.bf16.msra.mxu0 0
    %263 = vmatprep.subr.bf16.mxu0 0
    %264 = vmatpush1.bf16.msra.mxu0 0
    %265 = vmatprep.subr.bf16.mxu0 0
    %266 = vmatpush1.bf16.msra.mxu0 0
    %267 = vmatprep.subr.bf16.mxu0 0
    %268 = vmatpush1.bf16.msra.mxu0 0
    %269 = vmatprep.subr.bf16.mxu0 0
    %270 = vmatpush1.bf16.msra.mxu0 0
    %271 = vmatprep.subr.bf16.mxu0 0
    %272 = vmatpush1.bf16.msra.mxu0 0
    %273 = vmatprep.subr.bf16.mxu0 0
    %274 = vmatpush1.bf16.msra.mxu0 0
    %275 = vmatprep.subr.bf16.mxu0 0
    %276 = vmatpush1.bf16.msra.mxu0 0
    %277 = vmatprep.subr.bf16.mxu0 0
    %278 = vmatpush1.bf16.msra.mxu0 0
    %279 = vmatprep.subr.bf16.mxu0 0
    %280 = vmatpush1.bf16.msra.mxu0 0
    %281 = vmatprep.subr.bf16.mxu0 0
    %282 = vmatpush1.bf16.msra.mxu0 0
    %283 = vmatprep.subr.bf16.mxu0 0
    %284 = vmatpush1.bf16.msra.mxu0 0
    %285 = vmatprep.mubr.bf16.mxu0 0
    %286 = vmatmul.mubr.bf16.gmra.mrb[0].mxu0 %v248
    %v287 = vpop.f32.mrb[0].mxu0
    %v288 = vadd.f32 0.0, %v287
    %v289 = vpop.f32.mrb[0].mxu0
    %v290 = vpop.f32.mrb[0].mxu0
    %v291 = vadd.f32 0.0, %v290
    %v292 = vpop.f32.mrb[0].mxu0
    %293 = vmatprep.mubr.bf16.mxu0 0
    %294 = vmatmul.mubr.bf16.gmra.mrb[0].mxu0 %v251
    %v295 = vpop.f32.mrb[0].mxu0
    %v296 = vadd.f32 0.0, %v295
    %v297 = vpop.f32.mrb[0].mxu0
    %v298 = vpop.f32.mrb[0].mxu0
    %v299 = vadd.f32 0.0, %v298
    %v300 = vpop.f32.mrb[0].mxu0
    %301 = vdwg.mxu0
    %v302 = vpack.c.bf16 %v291, %v288
    %v303 = vpack.c.bf16 %v299, %v296
    %v304 = vlaneseq
    %v305 = vshrl.u32 %v304, 7
    %v306 = vsub.s32 0, %v305
    %v307 = vrot.slane %v219, %v306
    %308 = vmatprep.subr.bf16.mxu0 0
    %309 = vmatpush1.bf16.msra.mxu0 %v302
    %310 = vmatprep.subr.bf16.mxu0 0
    %311 = vmatpush1.bf16.msra.mxu0 %v303
    %312 = vmatprep.subr.bf16.mxu0 0
    %313 = vmatpush1.bf16.msra.mxu0 0
    %314 = vmatprep.subr.bf16.mxu0 0
    %315 = vmatpush1.bf16.msra.mxu0 0
    %316 = vmatprep.subr.bf16.mxu0 0
    %317 = vmatpush1.bf16.msra.mxu0 0
    %318 = vmatprep.subr.bf16.mxu0 0
    %319 = vmatpush1.bf16.msra.mxu0 0
    %320 = vmatprep.subr.bf16.mxu0 0
    %321 = vmatpush1.bf16.msra.mxu0 0
    %322 = vmatprep.subr.bf16.mxu0 0
    %323 = vmatpush1.bf16.msra.mxu0 0
    %324 = vmatprep.subr.bf16.mxu0 0
    %325 = vmatpush1.bf16.msra.mxu0 0
    %326 = vmatprep.subr.bf16.mxu0 0
    %327 = vmatpush1.bf16.msra.mxu0 0
    %328 = vmatprep.subr.bf16.mxu0 0
    %329 = vmatpush1.bf16.msra.mxu0 0
    %330 = vmatprep.subr.bf16.mxu0 0
    %331 = vmatpush1.bf16.msra.mxu0 0
    %332 = vmatprep.subr.bf16.mxu0 0
    %333 = vmatpush1.bf16.msra.mxu0 0
    %334 = vmatprep.subr.bf16.mxu0 0
    %335 = vmatpush1.bf16.msra.mxu0 0
    %336 = vmatprep.subr.bf16.mxu0 0
    %337 = vmatpush1.bf16.msra.mxu0 0
    %338 = vmatprep.subr.bf16.mxu0 0
    %339 = vmatpush1.bf16.msra.mxu0 0
    %340 = vmatprep.mubr.bf16.mxu0 0
    %341 = vmatmul.mubr.bf16.gmra.mrb[0].mxu0 %v153
    %v342 = vpop.f32.mrb[0].mxu0
    %v343 = vadd.f32 %v307, %v342
    %v344 = vpop.f32.mrb[0].mxu0
    %v345 = vpop.f32.mrb[0].mxu0
    %v346 = vadd.f32 %v307, %v345
    %v347 = vpop.f32.mrb[0].mxu0
    %348 = vmatprep.mubr.bf16.mxu0 0
    %349 = vmatmul.mubr.bf16.gmra.mrb[0].mxu0 %v156
    %v350 = vpop.f32.mrb[0].mxu0
    %v351 = vadd.f32 %v307, %v350
    %v352 = vpop.f32.mrb[0].mxu0
    %v353 = vpop.f32.mrb[0].mxu0
    %v354 = vadd.f32 %v307, %v353
    %v355 = vpop.f32.mrb[0].mxu0
    %356 = vdwg.mxu0
    %v357 = vmax.f32 %v343, 0.0
    %v358 = vmax.f32 %v346, 0.0
    %v359 = vmax.f32 %v351, 0.0
    %v360 = vmax.f32 %v354, 0.0
    %v361 = vld [vmem:[%s2 + $0x30] sm:$0xf]
    %v362 = vld [vmem:[%s2 + $0x34] sm:$0xf]
    %v363 = vld [vmem:[%s2 + $0x38] sm:$0xf]
    %v364 = vld [vmem:[%s2 + $0x3c] sm:$0xf]
    %v365 = vld [vmem:[#allocation2 + $0x2] sm:$0x1]
    %v366 = vpack.c.bf16 %v358, %v357
    %v367 = vpack.c.bf16 %v360, %v359
    %v372 = vunpack.c.l.b16 %v361
    %v373 = vunpack.c.l.b16 %v362
    %v374 = vunpack.c.l.b16 %v363
    %v375 = vunpack.c.l.b16 %v364
    %v376 = vpack.c.b16 %v373, %v372
    %v377 = vpack.c.b16 %v375, %v374
    %v381 = vsel %vm66, %v366, 0
    %v384 = vsel %vm66, %v367, 0
    %386 = vmatprep.subr.bf16.mxu0 0
    %387 = vmatpush1.bf16.msra.mxu0 %v376
    %388 = vmatprep.subr.bf16.mxu0 0
    %389 = vmatpush1.bf16.msra.mxu0 %v377
    %390 = vmatprep.subr.bf16.mxu0 0
    %391 = vmatpush1.bf16.msra.mxu0 0
    %392 = vmatprep.subr.bf16.mxu0 0
    %393 = vmatpush1.bf16.msra.mxu0 0
    %394 = vmatprep.subr.bf16.mxu0 0
    %395 = vmatpush1.bf16.msra.mxu0 0
    %396 = vmatprep.subr.bf16.mxu0 0
    %397 = vmatpush1.bf16.msra.mxu0 0
    %398 = vmatprep.subr.bf16.mxu0 0
    %399 = vmatpush1.bf16.msra.mxu0 0
    %400 = vmatprep.subr.bf16.mxu0 0
    %401 = vmatpush1.bf16.msra.mxu0 0
    %402 = vmatprep.subr.bf16.mxu0 0
    %403 = vmatpush1.bf16.msra.mxu0 0
    %404 = vmatprep.subr.bf16.mxu0 0
    %405 = vmatpush1.bf16.msra.mxu0 0
    %406 = vmatprep.subr.bf16.mxu0 0
    %407 = vmatpush1.bf16.msra.mxu0 0
    %408 = vmatprep.subr.bf16.mxu0 0
    %409 = vmatpush1.bf16.msra.mxu0 0
    %410 = vmatprep.subr.bf16.mxu0 0
    %411 = vmatpush1.bf16.msra.mxu0 0
    %412 = vmatprep.subr.bf16.mxu0 0
    %413 = vmatpush1.bf16.msra.mxu0 0
    %414 = vmatprep.subr.bf16.mxu0 0
    %415 = vmatpush1.bf16.msra.mxu0 0
    %416 = vmatprep.subr.bf16.mxu0 0
    %417 = vmatpush1.bf16.msra.mxu0 0
    %418 = vmatprep.mubr.bf16.mxu0 0
    %419 = vmatmul.mubr.bf16.gmra.mrb[0].mxu0 %v381
    %v420 = vpop.f32.mrb[0].mxu0
    %v421 = vadd.f32 0.0, %v420
    %v422 = vpop.f32.mrb[0].mxu0
    %v423 = vpop.f32.mrb[0].mxu0
    %v424 = vadd.f32 0.0, %v423
    %v425 = vpop.f32.mrb[0].mxu0
    %426 = vmatprep.mubr.bf16.mxu0 0
    %427 = vmatmul.mubr.bf16.gmra.mrb[0].mxu0 %v384
    %v428 = vpop.f32.mrb[0].mxu0
    %v429 = vadd.f32 0.0, %v428
    %v430 = vpop.f32.mrb[0].mxu0
    %v431 = vpop.f32.mrb[0].mxu0
    %v432 = vadd.f32 0.0, %v431
    %v433 = vpop.f32.mrb[0].mxu0
    %434 = vdwg.mxu0
    %v435 = vpack.c.bf16 %v424, %v421
    %v436 = vpack.c.bf16 %v432, %v429
    %v437 = vlaneseq
    %v438 = vshrl.u32 %v437, 7
    %v439 = vsub.s32 0, %v438
    %v440 = vrot.slane %v365, %v439
    %441 = vmatprep.subr.bf16.mxu0 0
    %442 = vmatpush1.bf16.msra.mxu0 %v435
    %443 = vmatprep.subr.bf16.mxu0 0
    %444 = vmatpush1.bf16.msra.mxu0 %v436
    %445 = vmatprep.subr.bf16.mxu0 0
    %446 = vmatpush1.bf16.msra.mxu0 0
    %447 = vmatprep.subr.bf16.mxu0 0
    %448 = vmatpush1.bf16.msra.mxu0 0
    %449 = vmatprep.subr.bf16.mxu0 0
    %450 = vmatpush1.bf16.msra.mxu0 0
    %451 = vmatprep.subr.bf16.mxu0 0
    %452 = vmatpush1.bf16.msra.mxu0 0
    %453 = vmatprep.subr.bf16.mxu0 0
    %454 = vmatpush1.bf16.msra.mxu0 0
    %455 = vmatprep.subr.bf16.mxu0 0
    %456 = vmatpush1.bf16.msra.mxu0 0
    %457 = vmatprep.subr.bf16.mxu0 0
    %458 = vmatpush1.bf16.msra.mxu0 0
    %459 = vmatprep.subr.bf16.mxu0 0
    %460 = vmatpush1.bf16.msra.mxu0 0
    %461 = vmatprep.subr.bf16.mxu0 0
    %462 = vmatpush1.bf16.msra.mxu0 0
    %463 = vmatprep.subr.bf16.mxu0 0
    %464 = vmatpush1.bf16.msra.mxu0 0
    %465 = vmatprep.subr.bf16.mxu0 0
    %466 = vmatpush1.bf16.msra.mxu0 0
    %467 = vmatprep.subr.bf16.mxu0 0
    %468 = vmatpush1.bf16.msra.mxu0 0
    %469 = vmatprep.subr.bf16.mxu0 0
    %470 = vmatpush1.bf16.msra.mxu0 0
    %471 = vmatprep.subr.bf16.mxu0 0
    %472 = vmatpush1.bf16.msra.mxu0 0
    %473 = vmatprep.mubr.bf16.mxu0 0
    %474 = vmatmul.mubr.bf16.gmra.mrb[0].mxu0 %v153
    %v475 = vpop.f32.mrb[0].mxu0
    %v476 = vadd.f32 %v440, %v475
    %v477 = vpop.f32.mrb[0].mxu0
    %v478 = vpop.f32.mrb[0].mxu0
    %v479 = vadd.f32 %v440, %v478
    %v480 = vpop.f32.mrb[0].mxu0
    %481 = vmatprep.mubr.bf16.mxu0 0
    %482 = vmatmul.mubr.bf16.gmra.mrb[0].mxu0 %v156
    %v483 = vpop.f32.mrb[0].mxu0
    %v484 = vadd.f32 %v440, %v483
    %v485 = vpop.f32.mrb[0].mxu0
    %v486 = vpop.f32.mrb[0].mxu0
    %v487 = vadd.f32 %v440, %v486
    %v488 = vpop.f32.mrb[0].mxu0
    %489 = vdwg.mxu0
    %v490 = vmax.f32 %v476, 0.0
    %v491 = vmax.f32 %v479, 0.0
    %v492 = vmax.f32 %v484, 0.0
    %v493 = vmax.f32 %v487, 0.0
    %v494 = vld [vmem:[%s2 + $0x40] sm:$0xf]
    %v495 = vld [vmem:[%s2 + $0x44] sm:$0xf]
    %v496 = vld [vmem:[#allocation2 + $0x3] sm:$0x1]
    %v497 = vpack.c.bf16 %v491, %v490
    %v498 = vpack.c.bf16 %v493, %v492
    %v501 = vunpack.c.l.b16 %v494
    %v502 = vunpack.c.l.b16 %v495
    %v503 = vpack.c.b16 %v502, %v501
    %vm505 = vcmask 130048
    %v507 = vsel %vm505, %v497, 0
    %v510 = vsel %vm505, %v498, 0
    %512 = vmatprep.subr.bf16.mxu0 0
    %513 = vmatpush1.bf16.msra.mxu0 %v503
    %514 = vmatprep.subr.bf16.mxu0 0
    %515 = vmatpush1.bf16.msra.mxu0 0
    %516 = vmatprep.subr.bf16.mxu0 0
    %517 = vmatpush1.bf16.msra.mxu0 0
    %518 = vmatprep.subr.bf16.mxu0 0
    %519 = vmatpush1.bf16.msra.mxu0 0
    %520 = vmatprep.subr.bf16.mxu0 0
    %521 = vmatpush1.bf16.msra.mxu0 0
    %522 = vmatprep.subr.bf16.mxu0 0
    %523 = vmatpush1.bf16.msra.mxu0 0
    %524 = vmatprep.subr.bf16.mxu0 0
    %525 = vmatpush1.bf16.msra.mxu0 0
    %526 = vmatprep.subr.bf16.mxu0 0
    %527 = vmatpush1.bf16.msra.mxu0 0
    %528 = vmatprep.subr.bf16.mxu0 0
    %529 = vmatpush1.bf16.msra.mxu0 0
    %530 = vmatprep.subr.bf16.mxu0 0
    %531 = vmatpush1.bf16.msra.mxu0 0
    %532 = vmatprep.subr.bf16.mxu0 0
    %533 = vmatpush1.bf16.msra.mxu0 0
    %534 = vmatprep.subr.bf16.mxu0 0
    %535 = vmatpush1.bf16.msra.mxu0 0
    %536 = vmatprep.subr.bf16.mxu0 0
    %537 = vmatpush1.bf16.msra.mxu0 0
    %538 = vmatprep.subr.bf16.mxu0 0
    %539 = vmatpush1.bf16.msra.mxu0 0
    %540 = vmatprep.subr.bf16.mxu0 0
    %541 = vmatpush1.bf16.msra.mxu0 0
    %542 = vmatprep.subr.bf16.mxu0 0
    %543 = vmatpush1.bf16.msra.mxu0 0
    %544 = vmatprep.mubr.bf16.mxu0 0
    %545 = vmatmul.mubr.bf16.gmra.mrb[0].mxu0 %v507
    %v546 = vpop.f32.mrb[0].mxu0
    %v547 = vadd.f32 0.0, %v546
    %v548 = vpop.f32.mrb[0].mxu0
    %v549 = vpop.f32.mrb[0].mxu0
    %v550 = vadd.f32 0.0, %v549
    %v551 = vpop.f32.mrb[0].mxu0
    %552 = vmatprep.mubr.bf16.mxu0 0
    %553 = vmatmul.mubr.bf16.gmra.mrb[0].mxu0 %v510
    %v554 = vpop.f32.mrb[0].mxu0
    %v555 = vadd.f32 0.0, %v554
    %v556 = vpop.f32.mrb[0].mxu0
    %v557 = vpop.f32.mrb[0].mxu0
    %v558 = vadd.f32 0.0, %v557
    %v559 = vpop.f32.mrb[0].mxu0
    %560 = vdwg.mxu0
    %v561 = vpack.c.bf16 %v550, %v547
    %v562 = vpack.c.bf16 %v558, %v555
    %v563 = vlaneseq
    %v564 = vshrl.u32 %v563, 7
    %v565 = vsub.s32 0, %v564
    %v566 = vrot.slane %v496, %v565
    %567 = vmatprep.subr.bf16.mxu0 0
    %568 = vmatpush1.bf16.msra.mxu0 %v561
    %569 = vmatprep.subr.bf16.mxu0 0
    %570 = vmatpush1.bf16.msra.mxu0 %v562
    %571 = vmatprep.subr.bf16.mxu0 0
    %572 = vmatpush1.bf16.msra.mxu0 0
    %573 = vmatprep.subr.bf16.mxu0 0
    %574 = vmatpush1.bf16.msra.mxu0 0
    %575 = vmatprep.subr.bf16.mxu0 0
    %576 = vmatpush1.bf16.msra.mxu0 0
    %577 = vmatprep.subr.bf16.mxu0 0
    %578 = vmatpush1.bf16.msra.mxu0 0
    %579 = vmatprep.subr.bf16.mxu0 0
    %580 = vmatpush1.bf16.msra.mxu0 0
    %581 = vmatprep.subr.bf16.mxu0 0
    %582 = vmatpush1.bf16.msra.mxu0 0
    %583 = vmatprep.subr.bf16.mxu0 0
    %584 = vmatpush1.bf16.msra.mxu0 0
    %585 = vmatprep.subr.bf16.mxu0 0
    %586 = vmatpush1.bf16.msra.mxu0 0
    %587 = vmatprep.subr.bf16.mxu0 0
    %588 = vmatpush1.bf16.msra.mxu0 0
    %589 = vmatprep.subr.bf16.mxu0 0
    %590 = vmatpush1.bf16.msra.mxu0 0
    %591 = vmatprep.subr.bf16.mxu0 0
    %592 = vmatpush1.bf16.msra.mxu0 0
    %593 = vmatprep.subr.bf16.mxu0 0
    %594 = vmatpush1.bf16.msra.mxu0 0
    %595 = vmatprep.subr.bf16.mxu0 0
    %596 = vmatpush1.bf16.msra.mxu0 0
    %597 = vmatprep.subr.bf16.mxu0 0
    %598 = vmatpush1.bf16.msra.mxu0 0
    %599 = vmatprep.mubr.bf16.mxu0 0
    %600 = vmatmul.mubr.bf16.gmra.mrb[0].mxu0 %v153
    %v601 = vpop.f32.mrb[0].mxu0
    %v602 = vadd.f32 %v566, %v601
    %v603 = vpop.f32.mrb[0].mxu0
    %v604 = vpop.f32.mrb[0].mxu0
    %v605 = vadd.f32 %v566, %v604
    %v606 = vpop.f32.mrb[0].mxu0
    %607 = vmatprep.mubr.bf16.mxu0 0
    %608 = vmatmul.mubr.bf16.gmra.mrb[0].mxu0 %v156
    %v609 = vpop.f32.mrb[0].mxu0
    %v610 = vadd.f32 %v566, %v609
    %v611 = vpop.f32.mrb[0].mxu0
    %v612 = vpop.f32.mrb[0].mxu0
    %v613 = vadd.f32 %v566, %v612
    %v614 = vpop.f32.mrb[0].mxu0
    %615 = vdwg.mxu0
    %v616 = vld [vmem:[%s2 + $0x48] sm:$0xf]
    %v617 = vld [vmem:[#allocation2 + $0x4] sm:$0x1]
    %v618 = vpack.c.bf16 %v605, %v602
    %v619 = vpack.c.bf16 %v613, %v610
    %620 = vmatprep.subr.bf16.mxu0 0
    %621 = vmatpush1.bf16.msra.mxu0 %v618
    %622 = vmatprep.subr.bf16.mxu0 0
    %623 = vmatpush1.bf16.msra.mxu0 %v619
    %624 = vmatprep.subr.bf16.mxu0 0
    %625 = vmatpush1.bf16.msra.mxu0 0
    %626 = vmatprep.subr.bf16.mxu0 0
    %627 = vmatpush1.bf16.msra.mxu0 0
    %628 = vmatprep.subr.bf16.mxu0 0
    %629 = vmatpush1.bf16.msra.mxu0 0
    %630 = vmatprep.subr.bf16.mxu0 0
    %631 = vmatpush1.bf16.msra.mxu0 0
    %632 = vmatprep.subr.bf16.mxu0 0
    %633 = vmatpush1.bf16.msra.mxu0 0
    %634 = vmatprep.subr.bf16.mxu0 0
    %635 = vmatpush1.bf16.msra.mxu0 0
    %636 = vmatprep.subr.bf16.mxu0 0
    %637 = vmatpush1.bf16.msra.mxu0 0
    %638 = vmatprep.subr.bf16.mxu0 0
    %639 = vmatpush1.bf16.msra.mxu0 0
    %640 = vmatprep.subr.bf16.mxu0 0
    %641 = vmatpush1.bf16.msra.mxu0 0
    %642 = vmatprep.subr.bf16.mxu0 0
    %643 = vmatpush1.bf16.msra.mxu0 0
    %644 = vmatprep.subr.bf16.mxu0 0
    %645 = vmatpush1.bf16.msra.mxu0 0
    %646 = vmatprep.subr.bf16.mxu0 0
    %647 = vmatpush1.bf16.msra.mxu0 0
    %648 = vmatprep.subr.bf16.mxu0 0
    %649 = vmatpush1.bf16.msra.mxu0 0
    %650 = vmatprep.subr.bf16.mxu0 0
    %651 = vmatpush1.bf16.msra.mxu0 0
    %652 = vmatprep.mubr.bf16.mxu0 0
    %653 = vmatmul.mubr.bf16.gmra.mrb[0].mxu0 %v153
    %v654 = vpop.f32.mrb[0].mxu0
    %v655 = vadd.f32 0.0, %v654
    %v656 = vpop.f32.mrb[0].mxu0
    %v657 = vpop.f32.mrb[0].mxu0
    %v658 = vadd.f32 0.0, %v657
    %v659 = vpop.f32.mrb[0].mxu0
    %660 = vmatprep.mubr.bf16.mxu0 0
    %661 = vmatmul.mubr.bf16.gmra.mrb[0].mxu0 %v156
    %v662 = vpop.f32.mrb[0].mxu0
    %v663 = vadd.f32 0.0, %v662
    %v664 = vpop.f32.mrb[0].mxu0
    %v665 = vpop.f32.mrb[0].mxu0
    %v666 = vadd.f32 0.0, %v665
    %v667 = vpop.f32.mrb[0].mxu0
    %668 = vdwg.mxu0
    %v669 = vpack.c.bf16 %v658, %v655
    %v670 = vpack.c.bf16 %v666, %v663
    %v671 = vlaneseq
    %v672 = vshrl.u32 %v671, 7
    %v673 = vsub.s32 0, %v672
    %v674 = vrot.slane %v617, %v673
    %vm675 = vcmask 64512
    %v677 = vsel %vm675, %v669, 0
    %v680 = vsel %vm675, %v670, 0
    %vm682 = vcmask 1043456
    %v684 = vsel %vm682, %v616, 0
    %686 = vmatprep.subr.bf16.mxu0 0
    %687 = vmatpush1.bf16.msra.mxu0 %v684
    %688 = vmatprep.subr.bf16.mxu0 0
    %689 = vmatpush1.bf16.msra.mxu0 0
    %690 = vmatprep.subr.bf16.mxu0 0
    %691 = vmatpush1.bf16.msra.mxu0 0
    %692 = vmatprep.subr.bf16.mxu0 0
    %693 = vmatpush1.bf16.msra.mxu0 0
    %694 = vmatprep.subr.bf16.mxu0 0
    %695 = vmatpush1.bf16.msra.mxu0 0
    %696 = vmatprep.subr.bf16.mxu0 0
    %697 = vmatpush1.bf16.msra.mxu0 0
    %698 = vmatprep.subr.bf16.mxu0 0
    %699 = vmatpush1.bf16.msra.mxu0 0
    %700 = vmatprep.subr.bf16.mxu0 0
    %701 = vmatpush1.bf16.msra.mxu0 0
    %702 = vmatprep.subr.bf16.mxu0 0
    %703 = vmatpush1.bf16.msra.mxu0 0
    %704 = vmatprep.subr.bf16.mxu0 0
    %705 = vmatpush1.bf16.msra.mxu0 0
    %706 = vmatprep.subr.bf16.mxu0 0
    %707 = vmatpush1.bf16.msra.mxu0 0
    %708 = vmatprep.subr.bf16.mxu0 0
    %709 = vmatpush1.bf16.msra.mxu0 0
    %710 = vmatprep.subr.bf16.mxu0 0
    %711 = vmatpush1.bf16.msra.mxu0 0
    %712 = vmatprep.subr.bf16.mxu0 0
    %713 = vmatpush1.bf16.msra.mxu0 0
    %714 = vmatprep.subr.bf16.mxu0 0
    %715 = vmatpush1.bf16.msra.mxu0 0
    %716 = vmatprep.subr.bf16.mxu0 0
    %717 = vmatpush1.bf16.msra.mxu0 0
    %718 = vmatprep.mubr.bf16.mxu0 0
    %719 = vmatmul.mubr.bf16.gmra.mrb[0].mxu0 %v677
    %v720 = vpop.f32.mrb[0].mxu0
    %v721 = vadd.f32 %v674, %v720
    %v722 = vpop.f32.mrb[0].mxu0
    %v723 = vpop.f32.mrb[0].mxu0
    %v724 = vadd.f32 %v674, %v723
    %v725 = vpop.f32.mrb[0].mxu0
    %726 = vmatprep.mubr.bf16.mxu0 0
    %727 = vmatmul.mubr.bf16.gmra.mrb[0].mxu0 %v680
    %v728 = vpop.f32.mrb[0].mxu0
    %v729 = vadd.f32 %v674, %v728
    %v730 = vpop.f32.mrb[0].mxu0
    %v731 = vpop.f32.mrb[0].mxu0
    %v732 = vadd.f32 %v674, %v731
    %v733 = vpop.f32.mrb[0].mxu0
    %734 = vdwg.mxu0
    %v735 = vmax.f32 %v721, 0.0
    %v736 = vmax.f32 %v724, 0.0
    %v737 = vmax.f32 %v729, 0.0
    %v738 = vmax.f32 %v732, 0.0
    %v739 = vld [vmem:[%s2 + $0x50] sm:$0xf]
    %v740 = vld [vmem:[%s2 + $0x54] sm:$0xf]
    %v741 = vld [vmem:[#allocation2 + $0x5] sm:$0x1]
    %v742 = vpack.c.bf16 %v736, %v735
    %v743 = vpack.c.bf16 %v738, %v737
    %744 = vmatprep.subr.bf16.mxu0 0
    %745 = vmatpush1.bf16.msra.mxu0 %v742
    %746 = vmatprep.subr.bf16.mxu0 0
    %747 = vmatpush1.bf16.msra.mxu0 %v743
    %748 = vmatprep.subr.bf16.mxu0 0
    %749 = vmatpush1.bf16.msra.mxu0 0
    %750 = vmatprep.subr.bf16.mxu0 0
    %751 = vmatpush1.bf16.msra.mxu0 0
    %752 = vmatprep.subr.bf16.mxu0 0
    %753 = vmatpush1.bf16.msra.mxu0 0
    %754 = vmatprep.subr.bf16.mxu0 0
    %755 = vmatpush1.bf16.msra.mxu0 0
    %756 = vmatprep.subr.bf16.mxu0 0
    %757 = vmatpush1.bf16.msra.mxu0 0
    %758 = vmatprep.subr.bf16.mxu0 0
    %759 = vmatpush1.bf16.msra.mxu0 0
    %760 = vmatprep.subr.bf16.mxu0 0
    %761 = vmatpush1.bf16.msra.mxu0 0
    %762 = vmatprep.subr.bf16.mxu0 0
    %763 = vmatpush1.bf16.msra.mxu0 0
    %764 = vmatprep.subr.bf16.mxu0 0
    %765 = vmatpush1.bf16.msra.mxu0 0
    %766 = vmatprep.subr.bf16.mxu0 0
    %767 = vmatpush1.bf16.msra.mxu0 0
    %768 = vmatprep.subr.bf16.mxu0 0
    %769 = vmatpush1.bf16.msra.mxu0 0
    %770 = vmatprep.subr.bf16.mxu0 0
    %771 = vmatpush1.bf16.msra.mxu0 0
    %772 = vmatprep.subr.bf16.mxu0 0
    %773 = vmatpush1.bf16.msra.mxu0 0
    %774 = vmatprep.subr.bf16.mxu0 0
    %775 = vmatpush1.bf16.msra.mxu0 0
    %776 = vmatprep.mubr.bf16.mxu0 0
    %777 = vmatmul.mubr.bf16.gmra.mrb[0].mxu0 %v153
    %v778 = vpop.f32.mrb[0].mxu0
    %v779 = vadd.f32 0.0, %v778
    %v780 = vpop.f32.mrb[0].mxu0
    %v781 = vpop.f32.mrb[0].mxu0
    %v782 = vadd.f32 0.0, %v781
    %v783 = vpop.f32.mrb[0].mxu0
    %784 = vmatprep.mubr.bf16.mxu0 0
    %785 = vmatmul.mubr.bf16.gmra.mrb[0].mxu0 %v156
    %v786 = vpop.f32.mrb[0].mxu0
    %v787 = vadd.f32 0.0, %v786
    %v788 = vpop.f32.mrb[0].mxu0
    %v789 = vpop.f32.mrb[0].mxu0
    %v790 = vadd.f32 0.0, %v789
    %v791 = vpop.f32.mrb[0].mxu0
    %792 = vdwg.mxu0
    %v793 = vpack.c.bf16 %v782, %v779
    %v794 = vpack.c.bf16 %v790, %v787
    %v795 = vlaneseq
    %v796 = vshrl.u32 %v795, 7
    %v797 = vsub.s32 0, %v796
    %v798 = vrot.slane %v741, %v797
    %v801 = vunpack.c.l.b16 %v739
    %v802 = vunpack.c.l.b16 %v740
    %v803 = vpack.c.b16 %v802, %v801
    %v806 = vsel %vm505, %v793, 0
    %v809 = vsel %vm505, %v794, 0
    %811 = vmatprep.subr.bf16.mxu0 0
    %812 = vmatpush1.bf16.msra.mxu0 %v803
    %813 = vmatprep.subr.bf16.mxu0 0
    %814 = vmatpush1.bf16.msra.mxu0 0
    %815 = vmatprep.subr.bf16.mxu0 0
    %816 = vmatpush1.bf16.msra.mxu0 0
    %817 = vmatprep.subr.bf16.mxu0 0
    %818 = vmatpush1.bf16.msra.mxu0 0
    %819 = vmatprep.subr.bf16.mxu0 0
    %820 = vmatpush1.bf16.msra.mxu0 0
    %821 = vmatprep.subr.bf16.mxu0 0
    %822 = vmatpush1.bf16.msra.mxu0 0
    %823 = vmatprep.subr.bf16.mxu0 0
    %824 = vmatpush1.bf16.msra.mxu0 0
    %825 = vmatprep.subr.bf16.mxu0 0
    %826 = vmatpush1.bf16.msra.mxu0 0
    %827 = vmatprep.subr.bf16.mxu0 0
    %828 = vmatpush1.bf16.msra.mxu0 0
    %829 = vmatprep.subr.bf16.mxu0 0
    %830 = vmatpush1.bf16.msra.mxu0 0
    %831 = vmatprep.subr.bf16.mxu0 0
    %832 = vmatpush1.bf16.msra.mxu0 0
    %833 = vmatprep.subr.bf16.mxu0 0
    %834 = vmatpush1.bf16.msra.mxu0 0
    %835 = vmatprep.subr.bf16.mxu0 0
    %836 = vmatpush1.bf16.msra.mxu0 0
    %837 = vmatprep.subr.bf16.mxu0 0
    %838 = vmatpush1.bf16.msra.mxu0 0
    %839 = vmatprep.subr.bf16.mxu0 0
    %840 = vmatpush1.bf16.msra.mxu0 0
    %841 = vmatprep.subr.bf16.mxu0 0
    %842 = vmatpush1.bf16.msra.mxu0 0
    %843 = vmatprep.mubr.bf16.mxu0 0
    %844 = vmatmul.mubr.bf16.gmra.mrb[0].mxu0 %v806
    %v845 = vpop.f32.mrb[0].mxu0
    %v846 = vadd.f32 %v798, %v845
    %v847 = vpop.f32.mrb[0].mxu0
    %v848 = vpop.f32.mrb[0].mxu0
    %v849 = vadd.f32 %v798, %v848
    %v850 = vpop.f32.mrb[0].mxu0
    %851 = vmatprep.mubr.bf16.mxu0 0
    %852 = vmatmul.mubr.bf16.gmra.mrb[0].mxu0 %v809
    %v853 = vpop.f32.mrb[0].mxu0
    %v854 = vadd.f32 %v798, %v853
    %v855 = vpop.f32.mrb[0].mxu0
    %v856 = vpop.f32.mrb[0].mxu0
    %v857 = vadd.f32 %v798, %v856
    %v858 = vpop.f32.mrb[0].mxu0
    %859 = vdwg.mxu0
    %v860 = vmax.f32 %v846, 0.0
    %v861 = vmax.f32 %v849, 0.0
    %v862 = vmax.f32 %v854, 0.0
    %v863 = vmax.f32 %v857, 0.0
    %v864 = vld [vmem:[%s2 + $0x58] sm:$0xf]
    %v865 = vld [vmem:[%s2 + $0x5c] sm:$0xf]
    %v866 = vld [vmem:[%s2 + $0x60] sm:$0xf]
    %v867 = vld [vmem:[%s2 + $0x64] sm:$0xf]
    %v868 = vld [vmem:[#allocation2 + $0x6] sm:$0x1]
    %v869 = vpack.c.bf16 %v861, %v860
    %v870 = vpack.c.bf16 %v863, %v862
    %871 = vmatprep.subr.bf16.mxu0 0
    %872 = vmatpush1.bf16.msra.mxu0 %v869
    %873 = vmatprep.subr.bf16.mxu0 0
    %874 = vmatpush1.bf16.msra.mxu0 %v870
    %875 = vmatprep.subr.bf16.mxu0 0
    %876 = vmatpush1.bf16.msra.mxu0 0
    %877 = vmatprep.subr.bf16.mxu0 0
    %878 = vmatpush1.bf16.msra.mxu0 0
    %879 = vmatprep.subr.bf16.mxu0 0
    %880 = vmatpush1.bf16.msra.mxu0 0
    %881 = vmatprep.subr.bf16.mxu0 0
    %882 = vmatpush1.bf16.msra.mxu0 0
    %883 = vmatprep.subr.bf16.mxu0 0
    %884 = vmatpush1.bf16.msra.mxu0 0
    %885 = vmatprep.subr.bf16.mxu0 0
    %886 = vmatpush1.bf16.msra.mxu0 0
    %887 = vmatprep.subr.bf16.mxu0 0
    %888 = vmatpush1.bf16.msra.mxu0 0
    %889 = vmatprep.subr.bf16.mxu0 0
    %890 = vmatpush1.bf16.msra.mxu0 0
    %891 = vmatprep.subr.bf16.mxu0 0
    %892 = vmatpush1.bf16.msra.mxu0 0
    %893 = vmatprep.subr.bf16.mxu0 0
    %894 = vmatpush1.bf16.msra.mxu0 0
    %895 = vmatprep.subr.bf16.mxu0 0
    %896 = vmatpush1.bf16.msra.mxu0 0
    %897 = vmatprep.subr.bf16.mxu0 0
    %898 = vmatpush1.bf16.msra.mxu0 0
    %899 = vmatprep.subr.bf16.mxu0 0
    %900 = vmatpush1.bf16.msra.mxu0 0
    %901 = vmatprep.subr.bf16.mxu0 0
    %902 = vmatpush1.bf16.msra.mxu0 0
    %903 = vmatprep.mubr.bf16.mxu0 0
    %904 = vmatmul.mubr.bf16.gmra.mrb[0].mxu0 %v153
    %v905 = vpop.f32.mrb[0].mxu0
    %v906 = vadd.f32 0.0, %v905
    %v907 = vpop.f32.mrb[0].mxu0
    %v908 = vpop.f32.mrb[0].mxu0
    %v909 = vadd.f32 0.0, %v908
    %v910 = vpop.f32.mrb[0].mxu0
    %911 = vmatprep.mubr.bf16.mxu0 0
    %912 = vmatmul.mubr.bf16.gmra.mrb[0].mxu0 %v156
    %v913 = vpop.f32.mrb[0].mxu0
    %v914 = vadd.f32 0.0, %v913
    %v915 = vpop.f32.mrb[0].mxu0
    %v916 = vpop.f32.mrb[0].mxu0
    %v917 = vadd.f32 0.0, %v916
    %v918 = vpop.f32.mrb[0].mxu0
    %919 = vdwg.mxu0
    %v920 = vpack.c.bf16 %v909, %v906
    %v921 = vpack.c.bf16 %v917, %v914
    %v922 = vlaneseq
    %v923 = vshrl.u32 %v922, 7
    %v924 = vsub.s32 0, %v923
    %v925 = vrot.slane %v868, %v924
    %v930 = vunpack.c.l.b16 %v864
    %v931 = vunpack.c.l.b16 %v865
    %v932 = vunpack.c.l.b16 %v866
    %v933 = vunpack.c.l.b16 %v867
    %v934 = vpack.c.b16 %v931, %v930
    %v935 = vpack.c.b16 %v933, %v932
    %v939 = vsel %vm66, %v920, 0
    %v942 = vsel %vm66, %v921, 0
    %944 = vmatprep.subr.bf16.mxu0 0
    %945 = vmatpush1.bf16.msra.mxu0 %v934
    %946 = vmatprep.subr.bf16.mxu0 0
    %947 = vmatpush1.bf16.msra.mxu0 %v935
    %948 = vmatprep.subr.bf16.mxu0 0
    %949 = vmatpush1.bf16.msra.mxu0 0
    %950 = vmatprep.subr.bf16.mxu0 0
    %951 = vmatpush1.bf16.msra.mxu0 0
    %952 = vmatprep.subr.bf16.mxu0 0
    %953 = vmatpush1.bf16.msra.mxu0 0
    %954 = vmatprep.subr.bf16.mxu0 0
    %955 = vmatpush1.bf16.msra.mxu0 0
    %956 = vmatprep.subr.bf16.mxu0 0
    %957 = vmatpush1.bf16.msra.mxu0 0
    %958 = vmatprep.subr.bf16.mxu0 0
    %959 = vmatpush1.bf16.msra.mxu0 0
    %960 = vmatprep.subr.bf16.mxu0 0
    %961 = vmatpush1.bf16.msra.mxu0 0
    %962 = vmatprep.subr.bf16.mxu0 0
    %963 = vmatpush1.bf16.msra.mxu0 0
    %964 = vmatprep.subr.bf16.mxu0 0
    %965 = vmatpush1.bf16.msra.mxu0 0
    %966 = vmatprep.subr.bf16.mxu0 0
    %967 = vmatpush1.bf16.msra.mxu0 0
    %968 = vmatprep.subr.bf16.mxu0 0
    %969 = vmatpush1.bf16.msra.mxu0 0
    %970 = vmatprep.subr.bf16.mxu0 0
    %971 = vmatpush1.bf16.msra.mxu0 0
    %972 = vmatprep.subr.bf16.mxu0 0
    %973 = vmatpush1.bf16.msra.mxu0 0
    %974 = vmatprep.subr.bf16.mxu0 0
    %975 = vmatpush1.bf16.msra.mxu0 0
    %976 = vmatprep.mubr.bf16.mxu0 0
    %977 = vmatmul.mubr.bf16.gmra.mrb[0].mxu0 %v939
    %v978 = vpop.f32.mrb[0].mxu0
    %v979 = vadd.f32 %v925, %v978
    %v980 = vpop.f32.mrb[0].mxu0
    %v981 = vpop.f32.mrb[0].mxu0
    %v982 = vadd.f32 %v925, %v981
    %v983 = vpop.f32.mrb[0].mxu0
    %984 = vmatprep.mubr.bf16.mxu0 0
    %985 = vmatmul.mubr.bf16.gmra.mrb[0].mxu0 %v942
    %v986 = vpop.f32.mrb[0].mxu0
    %v987 = vadd.f32 %v925, %v986
    %v988 = vpop.f32.mrb[0].mxu0
    %v989 = vpop.f32.mrb[0].mxu0
    %v990 = vadd.f32 %v925, %v989
    %v991 = vpop.f32.mrb[0].mxu0
    %992 = vdwg.mxu0
    %v993 = vmax.f32 %v979, 0.0
    %v994 = vmax.f32 %v982, 0.0
    %v995 = vmax.f32 %v987, 0.0
    %v996 = vmax.f32 %v990, 0.0
    %v997 = vld [vmem:[%s2 + $0x68] sm:$0xf]
    %v998 = vld [vmem:[%s2 + $0x6c] sm:$0xf]
    %v999 = vld [vmem:[%s2 + $0x70] sm:$0xf]
    %v1000 = vld [vmem:[%s2 + $0x74] sm:$0xf]
    %v1001 = vld [vmem:[%s2 + $0x78] sm:$0xf]
    %v1002 = vld [vmem:[%s2 + $0x7c] sm:$0xf]
    %v1003 = vld [vmem:[%s2 + $0x80] sm:$0xf]
    %v1004 = vld [vmem:[%s2 + $0x84] sm:$0xf]
    %v1005 = vld [vmem:[#allocation2 + $0x7] sm:$0x1]
    %v1006 = vpack.c.bf16 %v994, %v993
    %v1007 = vpack.c.bf16 %v996, %v995
    %v1016 = vunpack.c.l.b16 %v997
    %v1017 = vunpack.c.l.b16 %v998
    %v1018 = vunpack.c.l.b16 %v999
    %v1019 = vunpack.c.l.b16 %v1000
    %v1020 = vunpack.c.l.b16 %v1001
    %v1021 = vunpack.c.l.b16 %v1002
    %v1022 = vunpack.c.l.b16 %v1003
    %v1023 = vunpack.c.l.b16 %v1004
    %v1024 = vpack.c.b16 %v1017, %v1016
    %v1025 = vpack.c.b16 %v1019, %v1018
    %v1026 = vpack.c.b16 %v1021, %v1020
    %v1027 = vpack.c.b16 %v1023, %v1022
    %v1033 = vsel %vm246, %v1006, 0
    %v1036 = vsel %vm246, %v1007, 0
    %1038 = vmatprep.subr.bf16.mxu0 0
    %1039 = vmatpush1.bf16.msra.mxu0 %v1024
    %1040 = vmatprep.subr.bf16.mxu0 0
    %1041 = vmatpush1.bf16.msra.mxu0 %v1025
    %1042 = vmatprep.subr.bf16.mxu0 0
    %1043 = vmatpush1.bf16.msra.mxu0 %v1026
    %1044 = vmatprep.subr.bf16.mxu0 0
    %1045 = vmatpush1.bf16.msra.mxu0 %v1027
    %1046 = vmatprep.subr.bf16.mxu0 0
    %1047 = vmatpush1.bf16.msra.mxu0 0
    %1048 = vmatprep.subr.bf16.mxu0 0
    %1049 = vmatpush1.bf16.msra.mxu0 0
    %1050 = vmatprep.subr.bf16.mxu0 0
    %1051 = vmatpush1.bf16.msra.mxu0 0
    %1052 = vmatprep.subr.bf16.mxu0 0
    %1053 = vmatpush1.bf16.msra.mxu0 0
    %1054 = vmatprep.subr.bf16.mxu0 0
    %1055 = vmatpush1.bf16.msra.mxu0 0
    %1056 = vmatprep.subr.bf16.mxu0 0
    %1057 = vmatpush1.bf16.msra.mxu0 0
    %1058 = vmatprep.subr.bf16.mxu0 0
    %1059 = vmatpush1.bf16.msra.mxu0 0
    %1060 = vmatprep.subr.bf16.mxu0 0
    %1061 = vmatpush1.bf16.msra.mxu0 0
    %1062 = vmatprep.subr.bf16.mxu0 0
    %1063 = vmatpush1.bf16.msra.mxu0 0
    %1064 = vmatprep.subr.bf16.mxu0 0
    %1065 = vmatpush1.bf16.msra.mxu0 0
    %1066 = vmatprep.subr.bf16.mxu0 0
    %1067 = vmatpush1.bf16.msra.mxu0 0
    %1068 = vmatprep.subr.bf16.mxu0 0
    %1069 = vmatpush1.bf16.msra.mxu0 0
    %1070 = vmatprep.mubr.bf16.mxu0 0
    %1071 = vmatmul.mubr.bf16.gmra.mrb[0].mxu0 %v1033
    %v1072 = vpop.f32.mrb[0].mxu0
    %v1073 = vadd.f32 0.0, %v1072
    %v1074 = vpop.f32.mrb[0].mxu0
    %v1075 = vpop.f32.mrb[0].mxu0
    %v1076 = vadd.f32 0.0, %v1075
    %v1077 = vpop.f32.mrb[0].mxu0
    %1078 = vmatprep.mubr.bf16.mxu0 0
    %1079 = vmatmul.mubr.bf16.gmra.mrb[0].mxu0 %v1036
    %v1080 = vpop.f32.mrb[0].mxu0
    %v1081 = vadd.f32 0.0, %v1080
    %v1082 = vpop.f32.mrb[0].mxu0
    %v1083 = vpop.f32.mrb[0].mxu0
    %v1084 = vadd.f32 0.0, %v1083
    %v1085 = vpop.f32.mrb[0].mxu0
    %1086 = vdwg.mxu0
    %v1087 = vpack.c.bf16 %v1076, %v1073
    %v1088 = vpack.c.bf16 %v1084, %v1081
    %v1089 = vlaneseq
    %v1090 = vshrl.u32 %v1089, 7
    %v1091 = vsub.s32 0, %v1090
    %v1092 = vrot.slane %v1005, %v1091
    %1093 = vmatprep.subr.bf16.mxu0 0
    %1094 = vmatpush1.bf16.msra.mxu0 %v1087
    %1095 = vmatprep.subr.bf16.mxu0 0
    %1096 = vmatpush1.bf16.msra.mxu0 %v1088
    %1097 = vmatprep.subr.bf16.mxu0 0
    %1098 = vmatpush1.bf16.msra.mxu0 0
    %1099 = vmatprep.subr.bf16.mxu0 0
    %1100 = vmatpush1.bf16.msra.mxu0 0
    %1101 = vmatprep.subr.bf16.mxu0 0
    %1102 = vmatpush1.bf16.msra.mxu0 0
    %1103 = vmatprep.subr.bf16.mxu0 0
    %1104 = vmatpush1.bf16.msra.mxu0 0
    %1105 = vmatprep.subr.bf16.mxu0 0
    %1106 = vmatpush1.bf16.msra.mxu0 0
    %1107 = vmatprep.subr.bf16.mxu0 0
    %1108 = vmatpush1.bf16.msra.mxu0 0
    %1109 = vmatprep.subr.bf16.mxu0 0
    %1110 = vmatpush1.bf16.msra.mxu0 0
    %1111 = vmatprep.subr.bf16.mxu0 0
    %1112 = vmatpush1.bf16.msra.mxu0 0
    %1113 = vmatprep.subr.bf16.mxu0 0
    %1114 = vmatpush1.bf16.msra.mxu0 0
    %1115 = vmatprep.subr.bf16.mxu0 0
    %1116 = vmatpush1.bf16.msra.mxu0 0
    %1117 = vmatprep.subr.bf16.mxu0 0
    %1118 = vmatpush1.bf16.msra.mxu0 0
    %1119 = vmatprep.subr.bf16.mxu0 0
    %1120 = vmatpush1.bf16.msra.mxu0 0
    %1121 = vmatprep.subr.bf16.mxu0 0
    %1122 = vmatpush1.bf16.msra.mxu0 0
    %1123 = vmatprep.subr.bf16.mxu0 0
    %1124 = vmatpush1.bf16.msra.mxu0 0
    %1125 = vmatprep.mubr.bf16.mxu0 0
    %1126 = vmatmul.mubr.bf16.gmra.mrb[0].mxu0 %v153
    %v1127 = vpop.f32.mrb[0].mxu0
    %v1128 = vadd.f32 %v1092, %v1127
    %v1129 = vpop.f32.mrb[0].mxu0
    %v1130 = vpop.f32.mrb[0].mxu0
    %v1131 = vadd.f32 %v1092, %v1130
    %v1132 = vpop.f32.mrb[0].mxu0
    %1133 = vmatprep.mubr.bf16.mxu0 0
    %1134 = vmatmul.mubr.bf16.gmra.mrb[0].mxu0 %v156
    %v1135 = vpop.f32.mrb[0].mxu0
    %v1136 = vadd.f32 %v1092, %v1135
    %v1137 = vpop.f32.mrb[0].mxu0
    %v1138 = vpop.f32.mrb[0].mxu0
    %v1139 = vadd.f32 %v1092, %v1138
    %v1140 = vpop.f32.mrb[0].mxu0
    %1141 = vdwg.mxu0
    %1146 = vrot.lane.b32.xlu0 %v131, 56
    %v1147 = vpop.permute.xlu0 %1146
    %1148 = vrot.lane.b32.xlu0 %v132, 56
    %v1149 = vpop.permute.xlu0 %1148
    %1150 = vrot.lane.b32.xlu0 %v133, 56
    %v1151 = vpop.permute.xlu0 %1150
    %1152 = vrot.lane.b32.xlu0 %v134, 56
    %v1153 = vpop.permute.xlu0 %1152
    %1162 = vrot.lane.b32.xlu0 %v207, 80
    %v1163 = vpop.permute.xlu0 %1162
    %1164 = vrot.lane.b32.xlu0 %v208, 80
    %v1165 = vpop.permute.xlu0 %1164
    %1166 = vrot.lane.b32.xlu0 %v209, 80
    %v1167 = vpop.permute.xlu0 %1166
    %1168 = vrot.lane.b32.xlu0 %v210, 80
    %v1169 = vpop.permute.xlu0 %1168
    %1178 = vrot.lane.b32.xlu0 %v1128, 32
    %v1179 = vpop.permute.xlu0 %1178
    %1180 = vrot.lane.b32.xlu0 %v1131, 32
    %v1181 = vpop.permute.xlu0 %1180
    %1182 = vrot.lane.b32.xlu0 %v1136, 32
    %v1183 = vpop.permute.xlu0 %1182
    %1184 = vrot.lane.b32.xlu0 %v1139, 32
    %v1185 = vpop.permute.xlu0 %1184
    %v1190 = vsel %vm675, %v602, %v1147
    %v1191 = vsel %vm675, %v605, %v1149
    %v1192 = vsel %vm675, %v610, %v1151
    %v1193 = vsel %vm675, %v613, %v1153
    %v1194 = vsel %vm505, %v1190, %v1163
    %v1195 = vsel %vm505, %v1191, %v1165
    %v1196 = vsel %vm505, %v1192, %v1167
    %v1197 = vsel %vm505, %v1193, %v1169
    %v1198 = vsel %vm66, %v1194, %v1179
    %v1199 = vsel %vm66, %v1195, %v1181
    %v1200 = vsel %vm66, %v1196, %v1183
    %v1201 = vsel %vm66, %v1197, %v1185
    %vm1202 = vcmask 392192
    %1203 = vst.msk [vmem:[%s4] sm:$0xff] %vm1202, %v1198
    %1204 = vst.msk [vmem:[%s4 + $0x8] sm:$0xff] %vm1202, %v1199
    %1205 = vst.msk [vmem:[%s4 + $0x10] sm:$0xff] %vm1202, %v1200
    %1206 = vst.msk [vmem:[%s4 + $0x18] sm:$0xff] %vm1202, %v1201
    // Predicated region
    $region22: #{forward.1} parent=1 // pred_check
      _
    $region23: #{forward.1} parent=1 // pred_check_branch
      %1208 = sbr.rel (0) target = $region25
    $region24: #{forward.1} parent=1 // pred_region
      _
    $region25: #{forward.1} parent=1 // pred_fallthru
      _
    // Predicated region
    $region26: #{forward.1} parent=1 // pred_check
      _
    $region27: #{forward.1} parent=1 // pred_check_branch
      %1210 = sbr.rel (0) target = $region29
    $region28: #{forward.1} parent=1 // pred_region
      _
    $region29: #{forward.1} parent=1 // pred_fallthru
      _
    %1211 = vsyncpa [#allocation3], 1

</llo_original>
